<compile_context>
chip_gen: v7x
topology: tpu7x:2x2x1
jax: 0.10.0
libtpu: 0.0.40
codegen_flags: <defaults>
</compile_context>

<pallas_src>
import numpy as np
import jax
import jax.numpy as jnp
from jax import lax
from jax.experimental import pallas as pl
from jax.experimental.pallas import tpu as pltpu


# ----------------------- gate-projection GEMM kernels -----------------------

def _proj1_kernel(x_ref, w_ref, b_ref, o_ref):
    # o = x @ w + b   (bf16 MXU operands, f32 accumulation, bias fused)
    o_ref[...] = (jnp.dot(x_ref[...].astype(jnp.bfloat16), w_ref[...],
                          preferred_element_type=jnp.float32)
                  + b_ref[...])


def _proj2_kernel(x1_ref, x2_ref, w1_ref, w2_ref, b_ref, o_ref):
    # o = x1 @ w1 + x2 @ w2 + b  -- consumes the previous layer's two
    # direction slabs directly (K split), avoiding a host-side concat pass.
    acc = jnp.dot(x1_ref[...].astype(jnp.bfloat16), w1_ref[...],
                  preferred_element_type=jnp.float32)
    acc = acc + jnp.dot(x2_ref[...].astype(jnp.bfloat16), w2_ref[...],
                        preferred_element_type=jnp.float32)
    o_ref[...] = acc + b_ref[...]


def pallas_proj(xs, ws, bias, row_tile=256):
    """Row-tiled GEMM with fused bias: sum_i xs[i] @ ws[i] + bias.

    xs  : list (1 or 2) of [M, K_i] float32 activations
    ws  : list of [K_i, N] bfloat16 weights
    bias: [1, N] float32
    returns [M, N] float32.
    Tiled over M only (weights stay resident); row_tile=256 keeps
    double-buffered tiles comfortably inside v7x's smaller VMEM.
    """
    assert len(xs) == len(ws) and len(xs) in (1, 2)
    M = xs[0].shape[0]
    N = ws[0].shape[1]
    tm = min(row_tile, M)
    grid = (pl.cdiv(M, tm),)
    in_specs = ([pl.BlockSpec((tm, x.shape[1]), lambda i: (i, 0)) for x in xs]
                + [pl.BlockSpec(w.shape, lambda i: (0, 0)) for w in ws]
                + [pl.BlockSpec((1, N), lambda i: (0, 0))])
    kernel = _proj1_kernel if len(xs) == 1 else _proj2_kernel
    return pl.pallas_call(
        kernel,
        grid=grid,
        in_specs=in_specs,
        out_specs=pl.BlockSpec((tm, N), lambda i: (i, 0)),
        out_shape=jax.ShapeDtypeStruct((M, N), jnp.float32),
        compiler_params=pltpu.CompilerParams(
            dimension_semantics=("parallel",)),
    )(*xs, *ws, bias)


# ----------------------- fused bidirectional LSTM scan ----------------------

def _make_lstm_scan_kernel(tc, H, n_dirs, unroll):
    """One time-chunk of the (bi)directional LSTM recurrence per grid step."""

    def kernel(*args):
        if n_dirs == 2:
            (len_ref, xgf_ref, xgb_ref, whh_ref,
             of_ref, ob_ref, h_scr, c_scr) = args
        else:
            (len_ref, xgf_ref, whh_ref, of_ref, h_scr, c_scr) = args

        ci = pl.program_id(0)
        nc = pl.num_programs(0)

        @pl.when(ci == 0)
        def _():
            h_scr[...] = jnp.zeros_like(h_scr)
            c_scr[...] = jnp.zeros_like(c_scr)

        lengths = len_ref[...]          # [B, 1] int32, resident for all steps
        whh_f = whh_ref[0]              # [H, 4H] bf16, constant across grid
        if n_dirs == 2:
            whh_b = whh_ref[1]

        def cell(gates, h, c, m):
            # PyTorch gate order i, f, g, o.  (For toy H=32 the H-wide lane
            # slices are not 128-aligned; for realistic H >= 32*k they are.)
            i_g = jax.nn.sigmoid(gates[:, 0 * H:1 * H])
            f_g = jax.nn.sigmoid(gates[:, 1 * H:2 * H])
            g_g = jnp.tanh(gates[:, 2 * H:3 * H])
            o_g = jax.nn.sigmoid(gates[:, 3 * H:4 * H])
            c_new = f_g * c + i_g * g_g
            h_new = o_g * jnp.tanh(c_new)
            h_out = m * h_new + (1.0 - m) * h       # freeze state past x_len
            c_out = m * c_new + (1.0 - m) * c
            return h_out, c_out, m * h_new           # padded outputs -> 0

        def step(k, carry):
            # ---------- forward direction: global time t = ci*tc + k ----------
            t_f = ci * tc + k
            m_f = (t_f < lengths).astype(jnp.float32)          # [B, 1]
            h_f = h_scr[0]
            c_f = c_scr[0]
            g_f = xgf_ref[k] + jnp.dot(h_f.astype(jnp.bfloat16), whh_f,
                                       preferred_element_type=jnp.float32)
            h_f, c_f, y_f = cell(g_f, h_f, c_f, m_f)
            h_scr[0] = h_f
            c_scr[0] = c_f
            of_ref[k] = y_f

            if n_dirs == 2:
                # -------- backward direction: reverse-time iteration ----------
                # This grid step holds chunk (nc-1-ci) of the bwd gates/output
                # and walks it back-to-front -> no host-side reverse gathers.
                kb = tc - 1 - k
                t_b = (nc - 1 - ci) * tc + kb                  # = T-1 - t_f
                m_b = (t_b < lengths).astype(jnp.float32)
                h_b = h_scr[1]
                c_b = c_scr[1]
                g_b = xgb_ref[kb] + jnp.dot(h_b.astype(jnp.bfloat16), whh_b,
                                            preferred_element_type=jnp.float32)
                h_b, c_b, y_b = cell(g_b, h_b, c_b, m_b)
                h_scr[1] = h_b
                c_scr[1] = c_b
                ob_ref[kb] = y_b
            return carry

        lax.fori_loop(0, tc, step, 0, unroll=unroll)

    return kernel


def pallas_lstm_scan(xg_tm, lengths, whh_t, n_dirs, time_chunk=128):
    """LSTM recurrence for one layer, both directions fused.

    xg_tm   : [T, B, n_dirs*4H] f32 gate pre-activations (time-major); fwd
              gates occupy lanes [:4H], bwd gates lanes [4H:].
    lengths : [B, 1] int32 valid lengths.
    whh_t   : [n_dirs, H, 4H] bfloat16 recurrent weights (W_hh^T).
    returns a tuple of [T, B, H] f32 hidden sequences (zeroed past x_len).
    """
    T, B, Gtot = xg_tm.shape
    H = whh_t.shape[1]
    G = 4 * H
    assert Gtot == n_dirs * G
    if n_dirs == 2:
        # fwd/bwd lane-blocked views of xg need a 128-aligned split
        assert G % 128 == 0, "4*H must be a multiple of 128 for the bi path"

    tc = time_chunk if (T % time_chunk == 0 and time_chunk <= T) else T
    nc = T // tc
    unroll = tc <= 16

    kernel = _make_lstm_scan_kernel(tc, H, n_dirs, unroll)

    len_spec = pl.BlockSpec((B, 1), lambda i: (0, 0))
    whh_spec = pl.BlockSpec((n_dirs, H, G), lambda i: (0, 0, 0))
    if n_dirs == 2:
        in_specs = [
            len_spec,
            pl.BlockSpec((tc, B, G), lambda i: (i, 0, 0)),            # fwd gates
            pl.BlockSpec((tc, B, G), lambda i: (nc - 1 - i, 0, 1)),   # bwd gates
            whh_spec,
        ]
        out_specs = (
            pl.BlockSpec((tc, B, H), lambda i: (i, 0, 0)),            # fwd out
            pl.BlockSpec((tc, B, H), lambda i: (nc - 1 - i, 0, 0)),   # bwd out
        )
        out_shape = (jax.ShapeDtypeStruct((T, B, H), jnp.float32),
                     jax.ShapeDtypeStruct((T, B, H), jnp.float32))
        operands = (lengths, xg_tm, xg_tm, whh_t)
    else:
        in_specs = [len_spec,
                    pl.BlockSpec((tc, B, G), lambda i: (i, 0, 0)),
                    whh_spec]
        out_specs = (pl.BlockSpec((tc, B, H), lambda i: (i, 0, 0)),)
        out_shape = (jax.ShapeDtypeStruct((T, B, H), jnp.float32),)
        operands = (lengths, xg_tm, whh_t)

    return pl.pallas_call(
        kernel,
        grid=(nc,),
        in_specs=in_specs,
        out_specs=out_specs,
        out_shape=out_shape,
        scratch_shapes=[pltpu.VMEM((n_dirs, B, H), jnp.float32),   # h state
                        pltpu.VMEM((n_dirs, B, H), jnp.float32)],  # c state
        compiler_params=pltpu.CompilerParams(
            dimension_semantics=("arbitrary",)),
    )(*operands)


# --------------------------------- params -----------------------------------

def init_params(key, d_in, d_rnn, n_layers, bi):
    """PyTorch-layout parameters: Linear weight [d_rnn, d_in]; per (layer, dir)
    LSTM weights W_ih [4H, in], W_hh [4H, H], b_ih [4H], b_hh [4H]."""
    n_dirs = 2 if bi else 1
    k = 1.0 / np.sqrt(d_rnn)
    keys = jax.random.split(key, 1 + 4 * n_layers * n_dirs)
    w_in = jax.random.uniform(keys[0], (d_rnn, d_in), jnp.float32, -k, k)
    lstm = []
    ki = 1
    for layer in range(n_layers):
        in_size = d_rnn if layer == 0 else n_dirs * d_rnn
        dirs = []
        for _ in range(n_dirs):
            W_ih = jax.random.uniform(keys[ki + 0], (4 * d_rnn, in_size),
                                      jnp.float32, -k, k)
            W_hh = jax.random.uniform(keys[ki + 1], (4 * d_rnn, d_rnn),
                                      jnp.float32, -k, k)
            b_ih = jax.random.uniform(keys[ki + 2], (4 * d_rnn,),
                                      jnp.float32, -k, k)
            b_hh = jax.random.uniform(keys[ki + 3], (4 * d_rnn,),
                                      jnp.float32, -k, k)
            ki += 4
            dirs.append((W_ih, W_hh, b_ih, b_hh))
        lstm.append(dirs)
    return {"w_in": w_in, "lstm": lstm}


# ------------------------------ Pallas forward -------------------------------

def poselstm_forward(params, x, x_len, n_to_1=False, row_tile=256,
                     time_chunk=128):
    """Pallas-backed eval-mode forward of Poselstm.  x: [B,T,d_in], x_len: [B]."""
    B, T, d_in = x.shape
    H = params["w_in"].shape[0]
    n_layers = len(params["lstm"])
    n_dirs = len(params["lstm"][0]) if n_layers > 0 else 1
    M = T * B

    # One host-side transpose of the raw input; all kernels then work in
    # lane-dense time-major layout (no per-layer transposes / reverse gathers).
    x_tm = jnp.swapaxes(x, 0, 1).reshape(M, d_in)                  # [T*B, d_in]
    lengths = x_len.astype(jnp.int32).reshape(B, 1)                # [B, 1]

    # inp: nn.Linear(d_in, d_rnn, bias=False)
    w_in_t = params["w_in"].T.astype(jnp.bfloat16)                 # [d_in, H]
    feats = pallas_proj([x_tm], [w_in_t], jnp.zeros((1, H), jnp.float32),
                        row_tile)                                  # [T*B, H]

    if n_layers == 0:
        return jnp.swapaxes(feats.reshape(T, B, H), 0, 1)

    cur = [feats]                       # per-direction activation slabs [M, *]
    outs_tm = None
    for layer in range(n_layers):
        dirs = params["lstm"][layer]
        # one-off host-side weight packing (cold path)
        w_stack = jnp.concatenate([d[0].T for d in dirs],
                                  axis=1).astype(jnp.bfloat16)     # [K, nd*4H]
        b_stack = jnp.concatenate([d[2] + d[3] for d in dirs])[None, :]
        whh_t = jnp.stack([d[1].T for d in dirs]).astype(jnp.bfloat16)

        if len(cur) == 1:
            ws = [w_stack]
        else:                           # K-split: rows for fwd slab / bwd slab
            ws = [w_stack[:H, :], w_stack[H:, :]]

        # gate pre-activations for all timesteps, both directions fused
        xg = pallas_proj(cur, ws, b_stack, row_tile)               # [M, nd*4H]
        xg_tm = xg.reshape(T, B, n_dirs * 4 * H)

        # fused bidirectional recurrence (in-kernel time loop)
        outs_tm = pallas_lstm_scan(xg_tm, lengths, whh_t, n_dirs, time_chunk)
        cur = [o.reshape(M, H) for o in outs_tm]
        # rnn_dropout applies only between layers in training mode -> identity.

    if n_to_1:
        # final hidden per direction: fwd at t = len-1, bwd at t = 0
        fwd_last = outs_tm[0][x_len - 1, jnp.arange(B), :]         # [B, H]
        if n_dirs == 2:
            bwd_last = outs_tm[1][0]                               # [B, H]
            return jnp.concatenate([fwd_last, bwd_last], axis=-1)
        return fwd_last

    seq = outs_tm[0] if n_dirs == 1 else jnp.concatenate(outs_tm, axis=-1)
    return jnp.swapaxes(seq, 0, 1)                                 # [B,T,nd*H]


# ---------------------------- pure-JAX reference -----------------------------

def _mxu_dot(a, b):
    """Same dtype policy as the kernels: bf16 MXU operands, f32 accumulation."""
    return jnp.dot(a.astype(jnp.bfloat16), b.astype(jnp.bfloat16),
                   preferred_element_type=jnp.float32)


def reverse_padded(x, lengths):
    B, T = x.shape[0], x.shape[1]
    t = jnp.arange(T)[None, :]
    idx = lengths[:, None] - 1 - t
    valid = idx >= 0
    idx_c = jnp.clip(idx, 0, T - 1)
    g = jnp.take_along_axis(x, idx_c[:, :, None], axis=1)
    return jnp.where(valid[:, :, None], g, 0.0)


def _ref_lstm_dir(x, lengths, W_ih, W_hh, b_ih, b_hh, reverse):
    B, T, _ = x.shape
    H = W_hh.shape[1]
    inp = reverse_padded(x, lengths) if reverse else x
    mask = (jnp.arange(T)[None, :] < lengths[:, None]).astype(x.dtype)

    def step(carry, xt_mt):
        h, c = carry
        xt, mt = xt_mt
        gates = _mxu_dot(xt, W_ih.T) + b_ih + _mxu_dot(h, W_hh.T) + b_hh
        i, f, g, o = jnp.split(gates, 4, axis=-1)
        i, f, o = jax.nn.sigmoid(i), jax.nn.sigmoid(f), jax.nn.sigmoid(o)
        g = jnp.tanh(g)
        c_new = f * c + i * g
        h_new = o * jnp.tanh(c_new)
        return ((mt * h_new + (1 - mt) * h, mt * c_new + (1 - mt) * c),
                mt * h_new)

    xs = (jnp.swapaxes(inp, 0, 1), jnp.swapaxes(mask, 0, 1)[:, :, None])
    _, ys = lax.scan(step, (jnp.zeros((B, H)), jnp.zeros((B, H))), xs)
    out = jnp.swapaxes(ys, 0, 1)
    return reverse_padded(out, lengths) if reverse else out


def poselstm_reference(params, x, x_len, n_to_1=False):
    B, T, d_in = x.shape
    H = params["w_in"].shape[0]
    out = _mxu_dot(x.reshape(B * T, d_in), params["w_in"].T).reshape(B, T, H)
    dir_outs = [out]
    for layer_params in params["lstm"]:
        dir_outs = [_ref_lstm_dir(out, x_len, *layer_params[d],
                                  reverse=(d == 1))
                    for d in range(len(layer_params))]
        out = (jnp.concatenate(dir_outs, axis=-1)
               if len(dir_outs) > 1 else dir_outs[0])
    if n_to_1:
        fwd_last = jnp.take_along_axis(
            dir_outs[0], (x_len - 1)[:, None, None], axis=1)[:, 0, :]
        if len(dir_outs) > 1:
            bwd_last = dir_outs[1][:, 0, :]
            return jnp.concatenate([fwd_last, bwd_last], axis=-1)
        return fwd_last
    return out


# ----------------------------------- main ------------------------------------

if __name__ == "__main__":
    B, T = 2, 8
    d_in, d_rnn = 16, 32
    rnn_n_layers, rnn_bi = 2, True

    key = jax.random.PRNGKey(0)
    k_param, k_x = jax.random.split(key)
    params = init_params(k_param, d_in, d_rnn, rnn_n_layers, rnn_bi)

    x = jax.random.normal(k_x, (B, T, d_in), dtype=jnp.float32)
    x_len = jnp.array([8, 5], dtype=jnp.int32)

    # time_chunk=4 -> two time-chunks per layer, exercising the chunked
    # (streaming) path of the recurrence kernel incl. reverse chunk order.
    seq = jax.block_until_ready(
        poselstm_forward(params, x, x_len, n_to_1=False, time_chunk=4))
    assert seq.shape == (B, T, 2 * d_rnn)

    last = jax.block_until_ready(
        poselstm_forward(params, x, x_len, n_to_1=True, time_chunk=4))
    assert last.shape == (B, 2 * d_rnn)

    ref_seq = jax.block_until_ready(
        poselstm_reference(params, x, x_len, n_to_1=False))
    ref_last = jax.block_until_ready(
        poselstm_reference(params, x, x_len, n_to_1=True))

    np.testing.assert_allclose(np.asarray(seq), np.asarray(ref_seq),
                               atol=2e-2, rtol=2e-2)
    np.testing.assert_allclose(np.asarray(last), np.asarray(ref_last),
                               atol=2e-2, rtol=2e-2)
    print("KERNEL_OK")
</pallas_src>

<mosaic_0001>
module attributes {stable_mosaic.version = 11 : i64} {
  func.func @_proj1_kernel(%arg0: i32, %arg1: memref<16x16xf32, #tpu.memory_space<vmem>>, %arg2: memref<16x32xbf16, #tpu.memory_space<vmem>>, %arg3: memref<1x32xf32, #tpu.memory_space<vmem>>, %arg4: memref<16x32xf32, #tpu.memory_space<vmem>>) attributes {dimension_semantics = [#tpu.dimension_semantics<parallel>], iteration_bounds = array<i64: 1>, scalar_prefetch = 0 : i64, scratch_operands = 0 : i64, tpu.core_type = #tpu.core_type<tc>, window_params = [{transform_indices = @transform_0, window_bounds = array<i64: 16, 16>}, {pipeline_mode = #tpu.pipeline_mode<synchronous>, transform_indices = @transform_1, window_bounds = array<i64: 16, 32>}, {pipeline_mode = #tpu.pipeline_mode<synchronous>, transform_indices = @transform_2, window_bounds = array<i64: 1, 32>}, {transform_indices = @transform_3, window_bounds = array<i64: 16, 32>}]} {
    %c0 = arith.constant 0 : index
    %c0_0 = arith.constant 0 : index
    %0 = vector.load %arg1[%c0, %c0_0] : memref<16x16xf32, #tpu.memory_space<vmem>>, vector<16x16xf32>
    %1 = arith.truncf %0 : vector<16x16xf32> to vector<16x16xbf16>
    %c0_1 = arith.constant 0 : index
    %c0_2 = arith.constant 0 : index
    %2 = vector.load %arg2[%c0_1, %c0_2] : memref<16x32xbf16, #tpu.memory_space<vmem>>, vector<16x32xbf16>
    %cst = arith.constant dense<0.000000e+00> : vector<16x32xf32>
    %3 = tpu.matmul %1, %2, %cst {dimension_numbers = #tpu.dot_dimension_numbers<[1], [0], [0], [1], [0, 0, 1, 1], [], []>} : vector<16x16xbf16>, vector<16x32xbf16>, vector<16x32xf32> -> vector<16x32xf32>
    %c0_3 = arith.constant 0 : index
    %c0_4 = arith.constant 0 : index
    %4 = vector.load %arg3[%c0_3, %c0_4] : memref<1x32xf32, #tpu.memory_space<vmem>>, vector<1x32xf32>
    %5 = vector.broadcast %4 : vector<1x32xf32> to vector<16x32xf32>
    %6 = arith.addf %3, %5 : vector<16x32xf32>
    %c0_5 = arith.constant 0 : index
    %c0_6 = arith.constant 0 : index
    %7 = vector.load %arg4[%c0_5, %c0_6] : memref<16x32xf32, #tpu.memory_space<vmem>>, vector<16x32xf32>
    tpu.vector_store %arg4[%c0_5, %c0_6], %6 {strides = array<i32>} : memref<16x32xf32, #tpu.memory_space<vmem>>, vector<16x32xf32>,
    return
  }
  func.func @transform_0(%arg0: i32) -> (i32, i32) {
    %c0_i32 = arith.constant 0 : i32
    %c0_i32_0 = arith.constant 0 : i32
    return %arg0, %c0_i32 : i32, i32
  }
  func.func @transform_1(%arg0: i32) -> (i32, i32) {
    %c0_i32 = arith.constant 0 : i32
    %c0_i32_0 = arith.constant 0 : i32
    %c0_i32_1 = arith.constant 0 : i32
    return %c0_i32, %c0_i32_0 : i32, i32
  }
  func.func @transform_2(%arg0: i32) -> (i32, i32) {
    %c0_i32 = arith.constant 0 : i32
    %c0_i32_0 = arith.constant 0 : i32
    %c0_i32_1 = arith.constant 0 : i32
    return %c0_i32, %c0_i32_0 : i32, i32
  }
  func.func @transform_3(%arg0: i32) -> (i32, i32) {
    %c0_i32 = arith.constant 0 : i32
    %c0_i32_0 = arith.constant 0 : i32
    return %arg0, %c0_i32 : i32, i32
  }
}

</mosaic_0001>

<llo_original>
// kernel: tpu_custom_call.1
$region0: #{tpu_custom_call.1}
  #allocation0 [shape = 'u32[]', space=smem, size = 0x4, offset = 0x4, fixed_abs, tag = 'smem constant byte address 0x4 - core index']
  #allocation1 [shape = 'u32[144,128]{1,0:T(1,128)}', space=vmem, size = 0x12000, scoped, tag = 'internal scratch']
  %s0 = inlined_call_operand.hbm [shape: f32[16,16], index: 0, kind: input, shape index: {}]
  %s1 = inlined_call_operand.hbm [shape: bf16[16,32], index: 1, kind: input, shape index: {}]
  %s2 = inlined_call_operand.vmem [shape: f32[1,32], index: 2, kind: input, shape index: {}]
  %s3 = inlined_call_operand.hbm [shape: f32[16,32], index: 3, kind: output, shape index: {}]
  %s4 = sld [smem:[#allocation0]]
  $region30: #{tpu_custom_call.1} parent=0
    _
  %s6 = ssub.s32 1, %s4
  %s7 = scalar_select 0, %s6, %s4
  $region1: #{tpu_custom_call.1} parent=0
    #allocation2 [shape = 'u8[8192]{0}', space=vmem, size = 0x2000, scoped, tag = 'input window, operand 0, single buffered']
    #allocation3 [shape = 's32[1]{0}', space=sflag, size = 0x4, scoped, tag = 'scoped memory for tpu_custom_call.1']
    #allocation4 [shape = 's32[1]{0}', space=sflag, size = 0x4, scoped, tag = 'scoped memory for tpu_custom_call.1']
    #allocation5 [shape = 'u8[4096]{0}', space=vmem, size = 0x1000, scoped, tag = 'input window, operand 1, single buffered']
    #allocation6 [shape = 's32[1]{0}', space=sflag, size = 0x4, scoped, tag = 'scoped memory for tpu_custom_call.1']
    #allocation7 [shape = 'u8[8192]{0}', space=vmem, size = 0x2000, scoped, tag = 'output window, operand 0, single buffered']
    %8 = vsyncpa [#allocation3], 0
    %9 = vsyncpa [#allocation6], 0
    %10 = vsyncpa [#allocation4], 0
    // Predicated region
    $region2: #{tpu_custom_call.1} parent=1 // pred_check
      _
    $region3: #{tpu_custom_call.1} parent=1 // pred_check_branch
      %12 = sbr.rel (0) target = $region5
    $region4: #{tpu_custom_call.1} parent=1 // pred_region
      %s14 = ssub.s32 256, 256
      %15 = vsyncadd [#allocation3], %s14
      %s16 = sshll.u32 [#allocation2], 4
      %s17 = int_to_ptr.vmem [resolvable:$true] %s16
      %22 = dma.hbm_to_vmem [thread:$0]  %s0, 256, %s17, [#allocation3], 128, 128, 8
    $region5: #{tpu_custom_call.1} parent=1 // pred_fallthru
      _
    // Predicated region
    $region6: #{tpu_custom_call.1} parent=1 // pred_check
      _
    $region7: #{tpu_custom_call.1} parent=1 // pred_check_branch
      %24 = sbr.rel (0) target = $region9
    $region8: #{tpu_custom_call.1} parent=1 // pred_region
      %s26 = ssub.s32 128, 128
      %27 = vsyncadd [#allocation6], %s26
      %s28 = sshll.u32 [#allocation5], 4
      %s29 = int_to_ptr.vmem [resolvable:$true] %s28
      %34 = dma.hbm_to_vmem [thread:$0]  %s1, 128, %s29, [#allocation6], 64, 64, 4
    $region9: #{tpu_custom_call.1} parent=1 // pred_fallthru
      _
    // Predicated region
    $region10: #{tpu_custom_call.1} parent=1 // pred_check
      _
    $region11: #{tpu_custom_call.1} parent=1 // pred_check_branch
      %36 = sbr.rel (0) target = $region13
    $region12: #{tpu_custom_call.1} parent=1 // pred_region
      _
    $region13: #{tpu_custom_call.1} parent=1 // pred_fallthru
      _
    // Predicated region
    $region14: #{tpu_custom_call.1} parent=1 // pred_check
      _
    $region15: #{tpu_custom_call.1} parent=1 // pred_check_branch
      %38 = sbr.rel (0) target = $region17
    $region16: #{tpu_custom_call.1} parent=1 // pred_region
      %39 = dma.done [#allocation3], 256
    $region17: #{tpu_custom_call.1} parent=1 // pred_fallthru
      _
    // Predicated region
    $region18: #{tpu_custom_call.1} parent=1 // pred_check
      _
    $region19: #{tpu_custom_call.1} parent=1 // pred_check_branch
      %41 = sbr.rel (0) target = $region21
    $region20: #{tpu_custom_call.1} parent=1 // pred_region
      %42 = dma.done [#allocation6], 128
    $region21: #{tpu_custom_call.1} parent=1 // pred_fallthru
      _
    %v44 = vld [vmem:[#allocation2] sm:$0xff]
    %v45 = vld [vmem:[#allocation2 + $0x8] sm:$0xff]
    %v46 = vpack.c.bf16 %v45, %v44
    %v47 = vld [vmem:[#allocation5] sm:$0xf]
    %v48 = vld [vmem:[#allocation5 + $0x4] sm:$0xf]
    %v49 = vld [vmem:[%s2] sm:$0x1]
    %v51 = vlaneseq
    %v52 = vshrl.u32 %v51, 7
    %v53 = vsub.s32 0, %v52
    %v54 = vrot.slane %v49, %v53
    %v58 = vunpack.c.l.b16 %v47
    %v59 = vunpack.c.l.b16 %v48
    %v60 = vpack.c.b16 %v59, %v58
    %vm62 = vcmask 130048
    %v64 = vsel %vm62, %v46, 0
    %66 = vmatprep.subr.bf16.mxu0 0
    %67 = vmatpush1.bf16.msra.mxu0 %v60
    %68 = vmatprep.subr.bf16.mxu0 0
    %69 = vmatpush1.bf16.msra.mxu0 0
    %70 = vmatprep.subr.bf16.mxu0 0
    %71 = vmatpush1.bf16.msra.mxu0 0
    %72 = vmatprep.subr.bf16.mxu0 0
    %73 = vmatpush1.bf16.msra.mxu0 0
    %74 = vmatprep.subr.bf16.mxu0 0
    %75 = vmatpush1.bf16.msra.mxu0 0
    %76 = vmatprep.subr.bf16.mxu0 0
    %77 = vmatpush1.bf16.msra.mxu0 0
    %78 = vmatprep.subr.bf16.mxu0 0
    %79 = vmatpush1.bf16.msra.mxu0 0
    %80 = vmatprep.subr.bf16.mxu0 0
    %81 = vmatpush1.bf16.msra.mxu0 0
    %82 = vmatprep.subr.bf16.mxu0 0
    %83 = vmatpush1.bf16.msra.mxu0 0
    %84 = vmatprep.subr.bf16.mxu0 0
    %85 = vmatpush1.bf16.msra.mxu0 0
    %86 = vmatprep.subr.bf16.mxu0 0
    %87 = vmatpush1.bf16.msra.mxu0 0
    %88 = vmatprep.subr.bf16.mxu0 0
    %89 = vmatpush1.bf16.msra.mxu0 0
    %90 = vmatprep.subr.bf16.mxu0 0
    %91 = vmatpush1.bf16.msra.mxu0 0
    %92 = vmatprep.subr.bf16.mxu0 0
    %93 = vmatpush1.bf16.msra.mxu0 0
    %94 = vmatprep.subr.bf16.mxu0 0
    %95 = vmatpush1.bf16.msra.mxu0 0
    %96 = vmatprep.subr.bf16.mxu0 0
    %97 = vmatpush1.bf16.msra.mxu0 0
    %98 = vmatprep.mubr.bf16.mxu0 0
    %99 = vmatmul.mubr.bf16.gmra.mrb[0].mxu0 %v64
    %v100 = vpop.f32.mrb[0].mxu0
    %v101 = vadd.f32 %v54, %v100
    %v102 = vpop.f32.mrb[0].mxu0
    %v103 = vpop.f32.mrb[0].mxu0
    %v104 = vadd.f32 %v54, %v103
    %v105 = vpop.f32.mrb[0].mxu0
    %106 = vdwg.mxu0
    %vm107 = vcmask 261120
    %108 = vst.msk [vmem:[#allocation7] sm:$0xff] %vm107, %v101
    %109 = vst.msk [vmem:[#allocation7 + $0x8] sm:$0xff] %vm107, %v104
    // Predicated region
    $region22: #{tpu_custom_call.1} parent=1 // pred_check
      _
    $region23: #{tpu_custom_call.1} parent=1 // pred_check_branch
      %111 = sbr.rel (0) target = $region25
    $region24: #{tpu_custom_call.1} parent=1 // pred_region
      %s113 = ssub.s32 256, 256
      %114 = vsyncadd [#allocation4], %s113
      %s115 = sshll.u32 [#allocation7], 4
      %s116 = int_to_ptr.vmem [resolvable:$true] %s115
      %121 = dma.vmem_to_hbm [thread:$0]  %s116, 256, %s3, [#allocation4], 128, 128, 8
    $region25: #{tpu_custom_call.1} parent=1 // pred_fallthru
      _
    // Predicated region
    $region26: #{tpu_custom_call.1} parent=1 // pred_check
      _
    $region27: #{tpu_custom_call.1} parent=1 // pred_check_branch
      %123 = sbr.rel (0) target = $region29
    $region28: #{tpu_custom_call.1} parent=1 // pred_region
      %124 = dma.done [#allocation4], 256
    $region29: #{tpu_custom_call.1} parent=1 // pred_fallthru
      _
    %125 = vsyncpa [#allocation3], 1
    %126 = vsyncpa [#allocation6], 1
    %127 = vsyncpa [#allocation4], 1

</llo_original>
